<compile_context>
chip_gen: v6e
topology: v6e:2x2x1
jax: 0.10.0
libtpu: 0.0.40
codegen_flags: <defaults>
</compile_context>

<pallas_src>
import jax
import jax.numpy as jnp
from jax.experimental import pallas as pl
from jax.experimental.pallas import tpu as pltpu

# ---- module hyper-parameters (match PyTorch __init__ defaults) --------------
H = 25
DEPTH = 4
D = 2
WINDOW_WING = 3
WINDOW_SIZE = 1 + 2 * WINDOW_WING
INPUT_SIZE = D * 2 * WINDOW_SIZE                             # 28
OUTPUT_SIZE = 2
HIDDEN_SIZES = [INPUT_SIZE] + [H] * DEPTH + [OUTPUT_SIZE]    # [28,25,25,25,25,2]
N_LAYERS = len(HIDDEN_SIZES) - 1                             # 5
H_PAD = 32                                                   # padded feature (sublane) dim
NORM_EPS = 1e-12                                             # torch F.normalize default eps


# ---- Pallas kernel: full MLP + tanh + L2 normalization, one batch tile -------
def phase_mlp_kernel(x_ref, w1_ref, wr_ref, b_ref, pre_ref, xy_ref):
    """x (28, TN) -> prePhase (2, TN), phaseXY (2, TN)."""
    # Layer 1: (32, 28) @ (28, TN).  Padded output rows (>= layer width) have
    # zero weights and zero bias -> they stay exactly 0 through tanh, so the
    # padded feature lanes never need masking.
    a = jnp.dot(w1_ref[...], x_ref[...], preferred_element_type=jnp.float32)
    a = jnp.tanh(a + b_ref[0])

    # Layers 2..5: padded (32, 32) @ (32, TN); padding rows/cols stay zero.
    for i in range(1, N_LAYERS):
        z = jnp.dot(wr_ref[i - 1], a, preferred_element_type=jnp.float32) + b_ref[i]
        a = z if i == N_LAYERS - 1 else jnp.tanh(z)     # last layer: no activation

    pre = a[:OUTPUT_SIZE, :]                            # (2, TN); rows >= 2 of a are 0
    pre_ref[...] = pre

    # F.normalize(prePhase, p=2, dim=feature): x / max(||x||, eps)
    #   == x * rsqrt(max(||x||^2, eps^2))  -> rsqrt runs on the otherwise idle EUP,
    # removing the vector sqrt+divide from the VPU critical path.
    sumsq = jnp.sum(a * a, axis=0, keepdims=True)       # padded rows contribute 0
    inv = jax.lax.rsqrt(jnp.maximum(sumsq, NORM_EPS * NORM_EPS))
    xy_ref[...] = pre * inv


# ---- batch tile selection (lane axis; multiple of 128) ------------------------
def _batch_tile(n):
    for t in (2048, 1024, 512, 256, 128):
        if n >= t:
            return t
    return 128


# ---- wrapper ------------------------------------------------------------------
@jax.jit
def phase_network_forward(x, packed_params):
    w1, w_rest, b_pack = packed_params
    flat = x.reshape(INPUT_SIZE, -1)            # (28, N): batch on lanes, NO transpose
    n = flat.shape[1]

    tn = _batch_tile(n)
    n_pad = pl.cdiv(n, tn) * tn
    if n_pad != n:
        flat = jnp.pad(flat, ((0, 0), (0, n_pad - n)))

    pre_t, xy_t = pl.pallas_call(
        phase_mlp_kernel,
        out_shape=(jax.ShapeDtypeStruct((OUTPUT_SIZE, n_pad), jnp.float32),
                   jax.ShapeDtypeStruct((OUTPUT_SIZE, n_pad), jnp.float32)),
        grid=(n_pad // tn,),
        in_specs=[
            pl.BlockSpec((INPUT_SIZE, tn), lambda i: (0, i)),                 # x tile
            pl.BlockSpec((H_PAD, INPUT_SIZE), lambda i: (0, 0)),              # w1 (resident)
            pl.BlockSpec((N_LAYERS - 1, H_PAD, H_PAD), lambda i: (0, 0, 0)),  # w2..w5 (resident)
            pl.BlockSpec((N_LAYERS, H_PAD, 1), lambda i: (0, 0, 0)),          # biases (resident)
        ],
        out_specs=(pl.BlockSpec((OUTPUT_SIZE, tn), lambda i: (0, i)),
                   pl.BlockSpec((OUTPUT_SIZE, tn), lambda i: (0, i))),
        compiler_params=pltpu.CompilerParams(
            dimension_semantics=("parallel",)),  # megacore-shard batch on v7x; neutral v5e/v6e
    )(flat, w1, w_rest, b_pack)

    pre = pre_t[:, :n].T                         # (N, 2) — match torch output layout
    xy = xy_t[:, :n].T
    # TODO(synk): atan2 is computed in plain JAX on the tiny (2, N) kernel output
    # (Mosaic atan2 lowering is not guaranteed); the MLP hot path is in-kernel.
    rad = jnp.arctan2(xy_t[1, :n], xy_t[0, :n])  # phaseRad (N,)
    return pre, xy, rad


# ---- parameter init (weight std=sqrt(1/fan_in); torch init uses zero bias) ----
def init_params(key, random_bias=False):
    """Per-layer (weight (out, in), bias (out,)), torch-Linear layout."""
    params = []
    for i in range(N_LAYERS):
        fan_in, fan_out = HIDDEN_SIZES[i], HIDDEN_SIZES[i + 1]
        key, wk, bk = jax.random.split(key, 3)
        w = jax.random.normal(wk, (fan_out, fan_in), jnp.float32) * jnp.sqrt(1.0 / fan_in)
        if random_bias:   # exercise the bias path in the correctness check
            b = 0.1 * jax.random.normal(bk, (fan_out,), jnp.float32)
        else:             # faithful to nn.init.zeros_(bias)
            b = jnp.zeros((fan_out,), jnp.float32)
        params.append((w, b))
    return params


def pack_params(params):
    """Pack the 10 tiny weight/bias arrays into 3 zero-padded VMEM-friendly arrays."""
    w1 = jnp.zeros((H_PAD, INPUT_SIZE), jnp.float32)
    w1 = w1.at[:HIDDEN_SIZES[1], :].set(params[0][0])
    w_rest = jnp.zeros((N_LAYERS - 1, H_PAD, H_PAD), jnp.float32)
    b_pack = jnp.zeros((N_LAYERS, H_PAD, 1), jnp.float32)
    b_pack = b_pack.at[0, :HIDDEN_SIZES[1], 0].set(params[0][1])
    for i in range(1, N_LAYERS):
        fan_in, fan_out = HIDDEN_SIZES[i], HIDDEN_SIZES[i + 1]
        w_rest = w_rest.at[i - 1, :fan_out, :fan_in].set(params[i][0])
        b_pack = b_pack.at[i, :fan_out, 0].set(params[i][1])
    return w1, w_rest, b_pack


if __name__ == "__main__":
    key = jax.random.PRNGKey(0)
    pkey, xkey = jax.random.split(key)
    params = init_params(pkey, random_bias=True)   # nonzero biases -> stronger check
    packed = pack_params(params)

    N = 300                                        # small, deliberately not a tile multiple
    # x reshapes to (28, N) inside forward, exactly like the torch module.
    x = jax.random.normal(xkey, (INPUT_SIZE, N), jnp.float32)

    pre, xy, rad = phase_network_forward(x, packed)
    jax.block_until_ready((pre, xy, rad))

    # pure-JAX reference (mirrors the torch forward exactly)
    a = x.reshape(INPUT_SIZE, -1).T
    for i, (w, b) in enumerate(params):
        z = a @ w.T + b
        a = z if i == N_LAYERS - 1 else jnp.tanh(z)
    ref_pre = a
    nrm = jnp.sqrt(jnp.sum(a * a, axis=1, keepdims=True))
    ref_xy = a / jnp.maximum(nrm, NORM_EPS)
    ref_rad = jnp.arctan2(ref_xy[:, 1], ref_xy[:, 0])

    assert pre.shape == (N, OUTPUT_SIZE)
    assert xy.shape == (N, OUTPUT_SIZE)
    assert rad.shape == (N,)
    assert jnp.allclose(pre, ref_pre, atol=2e-3, rtol=2e-3)
    assert jnp.allclose(xy, ref_xy, atol=2e-3, rtol=2e-3)
    assert jnp.allclose(rad, ref_rad, atol=2e-3, rtol=2e-3)

    print("KERNEL_OK")
</pallas_src>

<mosaic_0001>
module attributes {stable_mosaic.version = 11 : i64} {
  func.func @phase_mlp_kernel(%arg0: i32, %arg1: memref<28x256xf32, #tpu.memory_space<vmem>>, %arg2: memref<32x28xf32, #tpu.memory_space<vmem>>, %arg3: memref<4x32x32xf32, #tpu.memory_space<vmem>>, %arg4: memref<5x32x1xf32, #tpu.memory_space<vmem>>, %arg5: memref<2x256xf32, #tpu.memory_space<vmem>>, %arg6: memref<2x256xf32, #tpu.memory_space<vmem>>) attributes {dimension_semantics = [#tpu.dimension_semantics<parallel>], iteration_bounds = array<i64: 2>, scalar_prefetch = 0 : i64, scratch_operands = 0 : i64, tpu.core_type = #tpu.core_type<tc>, window_params = [{transform_indices = @transform_0, window_bounds = array<i64: 28, 256>}, {pipeline_mode = #tpu.pipeline_mode<synchronous>, transform_indices = @transform_1, window_bounds = array<i64: 32, 28>}, {pipeline_mode = #tpu.pipeline_mode<synchronous>, transform_indices = @transform_2, window_bounds = array<i64: 4, 32, 32>}, {pipeline_mode = #tpu.pipeline_mode<synchronous>, transform_indices = @transform_3, window_bounds = array<i64: 5, 32, 1>}, {transform_indices = @transform_4, window_bounds = array<i64: 2, 256>}, {transform_indices = @transform_5, window_bounds = array<i64: 2, 256>}]} {
    %c0 = arith.constant 0 : index
    %c0_0 = arith.constant 0 : index
    %0 = vector.load %arg2[%c0, %c0_0] : memref<32x28xf32, #tpu.memory_space<vmem>>, vector<32x28xf32>
    %c0_1 = arith.constant 0 : index
    %c0_2 = arith.constant 0 : index
    %1 = vector.load %arg1[%c0_1, %c0_2] : memref<28x256xf32, #tpu.memory_space<vmem>>, vector<28x256xf32>
    %cst = arith.constant dense<0.000000e+00> : vector<32x256xf32>
    %2 = tpu.matmul %0, %1, %cst {dimension_numbers = #tpu.dot_dimension_numbers<[1], [0], [0], [1], [0, 0, 1, 1], [], []>} : vector<32x28xf32>, vector<28x256xf32>, vector<32x256xf32> -> vector<32x256xf32>
    %c0_3 = arith.constant 0 : index
    %c0_4 = arith.constant 0 : index
    %c0_5 = arith.constant 0 : index
    %3 = vector.load %arg4[%c0_3, %c0_4, %c0_5] : memref<5x32x1xf32, #tpu.memory_space<vmem>>, vector<1x32x1xf32>
    %4 = vector.shape_cast %3 : vector<1x32x1xf32> to vector<32x1xf32>
    %5 = vector.broadcast %4 : vector<32x1xf32> to vector<32x256xf32>
    %6 = arith.addf %2, %5 : vector<32x256xf32>
    %7 = math.tanh %6 : vector<32x256xf32>
    %c0_6 = arith.constant 0 : index
    %c0_7 = arith.constant 0 : index
    %c0_8 = arith.constant 0 : index
    %8 = vector.load %arg3[%c0_6, %c0_7, %c0_8] : memref<4x32x32xf32, #tpu.memory_space<vmem>>, vector<1x32x32xf32>
    %9 = vector.shape_cast %8 : vector<1x32x32xf32> to vector<32x32xf32>
    %cst_9 = arith.constant dense<0.000000e+00> : vector<32x256xf32>
    %10 = tpu.matmul %9, %7, %cst_9 {dimension_numbers = #tpu.dot_dimension_numbers<[1], [0], [0], [1], [0, 0, 1, 1], [], []>} : vector<32x32xf32>, vector<32x256xf32>, vector<32x256xf32> -> vector<32x256xf32>
    %c1 = arith.constant 1 : index
    %c0_10 = arith.constant 0 : index
    %c0_11 = arith.constant 0 : index
    %11 = vector.load %arg4[%c1, %c0_10, %c0_11] : memref<5x32x1xf32, #tpu.memory_space<vmem>>, vector<1x32x1xf32>
    %12 = vector.shape_cast %11 : vector<1x32x1xf32> to vector<32x1xf32>
    %13 = vector.broadcast %12 : vector<32x1xf32> to vector<32x256xf32>
    %14 = arith.addf %10, %13 : vector<32x256xf32>
    %15 = math.tanh %14 : vector<32x256xf32>
    %c1_12 = arith.constant 1 : index
    %c0_13 = arith.constant 0 : index
    %c0_14 = arith.constant 0 : index
    %16 = vector.load %arg3[%c1_12, %c0_13, %c0_14] : memref<4x32x32xf32, #tpu.memory_space<vmem>>, vector<1x32x32xf32>
    %17 = vector.shape_cast %16 : vector<1x32x32xf32> to vector<32x32xf32>
    %cst_15 = arith.constant dense<0.000000e+00> : vector<32x256xf32>
    %18 = tpu.matmul %17, %15, %cst_15 {dimension_numbers = #tpu.dot_dimension_numbers<[1], [0], [0], [1], [0, 0, 1, 1], [], []>} : vector<32x32xf32>, vector<32x256xf32>, vector<32x256xf32> -> vector<32x256xf32>
    %c2 = arith.constant 2 : index
    %c0_16 = arith.constant 0 : index
    %c0_17 = arith.constant 0 : index
    %19 = vector.load %arg4[%c2, %c0_16, %c0_17] : memref<5x32x1xf32, #tpu.memory_space<vmem>>, vector<1x32x1xf32>
    %20 = vector.shape_cast %19 : vector<1x32x1xf32> to vector<32x1xf32>
    %21 = vector.broadcast %20 : vector<32x1xf32> to vector<32x256xf32>
    %22 = arith.addf %18, %21 : vector<32x256xf32>
    %23 = math.tanh %22 : vector<32x256xf32>
    %c2_18 = arith.constant 2 : index
    %c0_19 = arith.constant 0 : index
    %c0_20 = arith.constant 0 : index
    %24 = vector.load %arg3[%c2_18, %c0_19, %c0_20] : memref<4x32x32xf32, #tpu.memory_space<vmem>>, vector<1x32x32xf32>
    %25 = vector.shape_cast %24 : vector<1x32x32xf32> to vector<32x32xf32>
    %cst_21 = arith.constant dense<0.000000e+00> : vector<32x256xf32>
    %26 = tpu.matmul %25, %23, %cst_21 {dimension_numbers = #tpu.dot_dimension_numbers<[1], [0], [0], [1], [0, 0, 1, 1], [], []>} : vector<32x32xf32>, vector<32x256xf32>, vector<32x256xf32> -> vector<32x256xf32>
    %c3 = arith.constant 3 : index
    %c0_22 = arith.constant 0 : index
    %c0_23 = arith.constant 0 : index
    %27 = vector.load %arg4[%c3, %c0_22, %c0_23] : memref<5x32x1xf32, #tpu.memory_space<vmem>>, vector<1x32x1xf32>
    %28 = vector.shape_cast %27 : vector<1x32x1xf32> to vector<32x1xf32>
    %29 = vector.broadcast %28 : vector<32x1xf32> to vector<32x256xf32>
    %30 = arith.addf %26, %29 : vector<32x256xf32>
    %31 = math.tanh %30 : vector<32x256xf32>
    %c3_24 = arith.constant 3 : index
    %c0_25 = arith.constant 0 : index
    %c0_26 = arith.constant 0 : index
    %32 = vector.load %arg3[%c3_24, %c0_25, %c0_26] : memref<4x32x32xf32, #tpu.memory_space<vmem>>, vector<1x32x32xf32>
    %33 = vector.shape_cast %32 : vector<1x32x32xf32> to vector<32x32xf32>
    %cst_27 = arith.constant dense<0.000000e+00> : vector<32x256xf32>
    %34 = tpu.matmul %33, %31, %cst_27 {dimension_numbers = #tpu.dot_dimension_numbers<[1], [0], [0], [1], [0, 0, 1, 1], [], []>} : vector<32x32xf32>, vector<32x256xf32>, vector<32x256xf32> -> vector<32x256xf32>
    %c4 = arith.constant 4 : index
    %c0_28 = arith.constant 0 : index
    %c0_29 = arith.constant 0 : index
    %35 = vector.load %arg4[%c4, %c0_28, %c0_29] : memref<5x32x1xf32, #tpu.memory_space<vmem>>, vector<1x32x1xf32>
    %36 = vector.shape_cast %35 : vector<1x32x1xf32> to vector<32x1xf32>
    %37 = vector.broadcast %36 : vector<32x1xf32> to vector<32x256xf32>
    %38 = arith.addf %34, %37 : vector<32x256xf32>
    %39 = vector.extract_strided_slice %38 {offsets = [0, 0], sizes = [2, 256], strides = [1, 1]} : vector<32x256xf32> to vector<2x256xf32>
    %c0_30 = arith.constant 0 : index
    %c0_31 = arith.constant 0 : index
    %40 = vector.load %arg5[%c0_30, %c0_31] : memref<2x256xf32, #tpu.memory_space<vmem>>, vector<2x256xf32>
    tpu.vector_store %arg5[%c0_30, %c0_31], %39 {strides = array<i32>} : memref<2x256xf32, #tpu.memory_space<vmem>>, vector<2x256xf32>,
    %41 = arith.mulf %38, %38 : vector<32x256xf32>
    %cst_32 = arith.constant dense<0.000000e+00> : vector<256xf32>
    %42 = vector.multi_reduction <add>, %41, %cst_32 [0] : vector<32x256xf32> to vector<256xf32>
    %43 = vector.shape_cast %42 : vector<256xf32> to vector<1x256xf32>
    %cst_33 = arith.constant 1.000000e-24 : f32
    %44 = vector.broadcast %cst_33 : f32 to vector<1x256xf32>
    %45 = arith.maximumf %43, %44 : vector<1x256xf32>
    %46 = math.rsqrt %45 : vector<1x256xf32>
    %47 = vector.broadcast %46 : vector<1x256xf32> to vector<2x256xf32>
    %48 = arith.mulf %39, %47 : vector<2x256xf32>
    %c0_34 = arith.constant 0 : index
    %c0_35 = arith.constant 0 : index
    %49 = vector.load %arg6[%c0_34, %c0_35] : memref<2x256xf32, #tpu.memory_space<vmem>>, vector<2x256xf32>
    tpu.vector_store %arg6[%c0_34, %c0_35], %48 {strides = array<i32>} : memref<2x256xf32, #tpu.memory_space<vmem>>, vector<2x256xf32>,
    return
  }
  func.func @transform_0(%arg0: i32) -> (i32, i32) {
    %c0_i32 = arith.constant 0 : i32
    %c0_i32_0 = arith.constant 0 : i32
    return %c0_i32, %arg0 : i32, i32
  }
  func.func @transform_1(%arg0: i32) -> (i32, i32) {
    %c0_i32 = arith.constant 0 : i32
    %c0_i32_0 = arith.constant 0 : i32
    %c0_i32_1 = arith.constant 0 : i32
    return %c0_i32, %c0_i32_0 : i32, i32
  }
  func.func @transform_2(%arg0: i32) -> (i32, i32, i32) {
    %c0_i32 = arith.constant 0 : i32
    %c0_i32_0 = arith.constant 0 : i32
    %c0_i32_1 = arith.constant 0 : i32
    %c0_i32_2 = arith.constant 0 : i32
    return %c0_i32, %c0_i32_0, %c0_i32_1 : i32, i32, i32
  }
  func.func @transform_3(%arg0: i32) -> (i32, i32, i32) {
    %c0_i32 = arith.constant 0 : i32
    %c0_i32_0 = arith.constant 0 : i32
    %c0_i32_1 = arith.constant 0 : i32
    %c0_i32_2 = arith.constant 0 : i32
    return %c0_i32, %c0_i32_0, %c0_i32_1 : i32, i32, i32
  }
  func.func @transform_4(%arg0: i32) -> (i32, i32) {
    %c0_i32 = arith.constant 0 : i32
    %c0_i32_0 = arith.constant 0 : i32
    return %c0_i32, %arg0 : i32, i32
  }
  func.func @transform_5(%arg0: i32) -> (i32, i32) {
    %c0_i32 = arith.constant 0 : i32
    %c0_i32_0 = arith.constant 0 : i32
    return %c0_i32, %arg0 : i32, i32
  }
}

</mosaic_0001>

<llo_original>
// kernel: phase_network_forward.1
$region0: #{phase_network_forward.1}
  #allocation0 [shape = 'u32[]', space=smem, size = 0x4, offset = 0x4, fixed_abs, tag = 'smem constant byte address 0x4 - core index']
  #allocation1 [shape = 'u32[144,128]{1,0:T(1,128)}', space=vmem, size = 0x12000, scoped, tag = 'internal scratch']
  %s0 = inlined_call_operand.vmem [shape: f32[28,512], index: 0, kind: input, shape index: {}]
  %s1 = inlined_call_operand.vmem [shape: f32[32,28], index: 1, kind: input, shape index: {}]
  %s2 = inlined_call_operand.vmem [shape: f32[4,32,32], index: 2, kind: input, shape index: {}]
  %s3 = inlined_call_operand.vmem [shape: f32[5,32,1], index: 3, kind: input, shape index: {}]
  %s4 = inlined_call_operand.vmem [shape: f32[2,512], index: 4, kind: output, shape index: {0}]
  %s5 = inlined_call_operand.vmem [shape: f32[2,512], index: 5, kind: output, shape index: {1}]
  %6 = xla_tuple %s4, %s5
  %s7 = sld [smem:[#allocation0]]
  $region80: #{phase_network_forward.1} parent=0
    _
  %s9 = ssub.s32 1, %s7
  %s10 = scalar_select 0, %s9, %s7
  $region1: #{phase_network_forward.1} parent=0
    #allocation2 [shape = 'u8[65536]{0}', space=vmem, size = 0x10000, scoped, tag = 'input window, operand 0']
    loop: start=0, step=1, limit=4
    $region2: #{phase_network_forward.1} parent=1 // loop_pre_header
      _
    $region3: #{phase_network_forward.1} parent=1 // loop_header
      %s12 = sphi 0, %s16
      %p13 = scmp.ge.s32.totalorder %s12, 4
      %s22 = sphi 0, %s24
      %s25 = sphi 0, %s22
      %s26 = sphi 0, %s25
      %s42 = sphi 0, %s26
      %s46 = sphi 0, %s46
      %s48 = sphi 0, %s46
      %s49 = sphi 0, %s48
      %s63 = sphi 0, %s49
      %s67 = sphi 0, %s67
      %s69 = sphi 0, %s67
      %s70 = sphi 0, %s69
      %s84 = sphi 0, %s70
      %s88 = sphi 0, %s88
      %s90 = sphi 0, %s88
      %s91 = sphi 0, %s90
      %s105 = sphi 0, %s91
      %s111 = sphi 0, %s113
      %s114 = sphi 0, %s111
      %s115 = sphi 0, %s114
      %s131 = sphi 0, %s115
      %s137 = sphi 0, %s139
      %s140 = sphi 0, %s137
      %s141 = sphi 0, %s140
      %s157 = sphi 0, %s141
    $region4: #{phase_network_forward.1} parent=1 // loop_header_branch
      %15 = sbr.rel (%p13) target = $region8
    $region5: #{phase_network_forward.1} parent=1 // loop_body
      %s17 = ssub.s32 %s12, 1
      %s18 = ssub.s32 %s12, 2
      %s19 = sadd.s32 %s12, 1
      %s20 = ssub.s32 %s12, %s19
      %p21 = scmp.eq.s32.totalorder %s20, 0
      %s23 = sadd.s32 %s22, 1
      %s24 = scalar_select %p21, %s22, %s23
      %p27 = pneg %p21
      %p28 = scmp.eq.s32.totalorder %s12, 1
      %p29 = por %p27, %p28
      %p30 = scmp.ne.s32.totalorder %s22, %s25
      %p31 = scmp.eq.s32.totalorder %s12, 0
      %p32 = por %p30, %p31
      %p33 = scmp.ne.s32.totalorder %s22, %s25
      %p34 = scmp.eq.s32.totalorder %s17, 1
      %p35 = por %p33, %p34
      %p36 = scmp.ne.s32.totalorder %s25, %s26
      %p37 = scmp.eq.s32.totalorder %s17, 0
      %p38 = por %p36, %p37
      %p39 = scmp.ne.s32.totalorder %s25, %s26
      %p40 = scmp.eq.s32.totalorder %s18, 1
      %p41 = por %p39, %p40
      %p43 = scmp.ne.s32.totalorder %s26, %s42
      %p44 = scmp.eq.s32.totalorder %s18, 0
      %p45 = por %p43, %p44
      %s47 = sadd.s32 %s46, 1
      %p50 = scmp.eq.s32.totalorder %s12, 1
      %p51 = scmp.ne.s32.totalorder %s46, %s48
      %p52 = scmp.eq.s32.totalorder %s12, 0
      %p53 = por %p51, %p52
      %p54 = scmp.ne.s32.totalorder %s46, %s48
      %p55 = scmp.eq.s32.totalorder %s17, 1
      %p56 = por %p54, %p55
      %p57 = scmp.ne.s32.totalorder %s48, %s49
      %p58 = scmp.eq.s32.totalorder %s17, 0
      %p59 = por %p57, %p58
      %p60 = scmp.ne.s32.totalorder %s48, %s49
      %p61 = scmp.eq.s32.totalorder %s18, 1
      %p62 = por %p60, %p61
      %p64 = scmp.ne.s32.totalorder %s49, %s63
      %p65 = scmp.eq.s32.totalorder %s18, 0
      %p66 = por %p64, %p65
      %s68 = sadd.s32 %s67, 1
      %p71 = scmp.eq.s32.totalorder %s12, 1
      %p72 = scmp.ne.s32.totalorder %s67, %s69
      %p73 = scmp.eq.s32.totalorder %s12, 0
      %p74 = por %p72, %p73
      %p75 = scmp.ne.s32.totalorder %s67, %s69
      %p76 = scmp.eq.s32.totalorder %s17, 1
      %p77 = por %p75, %p76
      %p78 = scmp.ne.s32.totalorder %s69, %s70
      %p79 = scmp.eq.s32.totalorder %s17, 0
      %p80 = por %p78, %p79
      %p81 = scmp.ne.s32.totalorder %s69, %s70
      %p82 = scmp.eq.s32.totalorder %s18, 1
      %p83 = por %p81, %p82
      %p85 = scmp.ne.s32.totalorder %s70, %s84
      %p86 = scmp.eq.s32.totalorder %s18, 0
      %p87 = por %p85, %p86
      %s89 = sadd.s32 %s88, 1
      %p92 = scmp.eq.s32.totalorder %s12, 1
      %p93 = scmp.ne.s32.totalorder %s88, %s90
      %p94 = scmp.eq.s32.totalorder %s12, 0
      %p95 = por %p93, %p94
      %p96 = scmp.ne.s32.totalorder %s88, %s90
      %p97 = scmp.eq.s32.totalorder %s17, 1
      %p98 = por %p96, %p97
      %p99 = scmp.ne.s32.totalorder %s90, %s91
      %p100 = scmp.eq.s32.totalorder %s17, 0
      %p101 = por %p99, %p100
      %p102 = scmp.ne.s32.totalorder %s90, %s91
      %p103 = scmp.eq.s32.totalorder %s18, 1
      %p104 = por %p102, %p103
      %p106 = scmp.ne.s32.totalorder %s91, %s105
      %p107 = scmp.eq.s32.totalorder %s18, 0
      %p108 = por %p106, %p107
      %s109 = ssub.s32 %s12, %s19
      %p110 = scmp.eq.s32.totalorder %s109, 0
      %s112 = sadd.s32 %s111, 1
      %s113 = scalar_select %p110, %s111, %s112
      %p116 = pneg %p110
      %p117 = scmp.eq.s32.totalorder %s12, 1
      %p118 = por %p116, %p117
      %p119 = scmp.ne.s32.totalorder %s111, %s114
      %p120 = scmp.eq.s32.totalorder %s12, 0
      %p121 = por %p119, %p120
      %p122 = scmp.ne.s32.totalorder %s111, %s114
      %p123 = scmp.eq.s32.totalorder %s17, 1
      %p124 = por %p122, %p123
      %p125 = scmp.ne.s32.totalorder %s114, %s115
      %p126 = scmp.eq.s32.totalorder %s17, 0
      %p127 = por %p125, %p126
      %p128 = scmp.ne.s32.totalorder %s114, %s115
      %p129 = scmp.eq.s32.totalorder %s18, 1
      %p130 = por %p128, %p129
      %p132 = scmp.ne.s32.totalorder %s115, %s131
      %p133 = scmp.eq.s32.totalorder %s18, 0
      %p134 = por %p132, %p133
      %s135 = ssub.s32 %s12, %s19
      %p136 = scmp.eq.s32.totalorder %s135, 0
      %s138 = sadd.s32 %s137, 1
      %s139 = scalar_select %p136, %s137, %s138
      %p142 = pneg %p136
      %p143 = scmp.eq.s32.totalorder %s12, 1
      %p144 = por %p142, %p143
      %p145 = scmp.ne.s32.totalorder %s137, %s140
      %p146 = scmp.eq.s32.totalorder %s12, 0
      %p147 = por %p145, %p146
      %p148 = scmp.ne.s32.totalorder %s137, %s140
      %p149 = scmp.eq.s32.totalorder %s17, 1
      %p150 = por %p148, %p149
      %p151 = scmp.ne.s32.totalorder %s140, %s141
      %p152 = scmp.eq.s32.totalorder %s17, 0
      %p153 = por %p151, %p152
      %p154 = scmp.ne.s32.totalorder %s140, %s141
      %p155 = scmp.eq.s32.totalorder %s18, 1
      %p156 = por %p154, %p155
      %p158 = scmp.ne.s32.totalorder %s141, %s157
      %p159 = scmp.eq.s32.totalorder %s18, 0
      %p160 = por %p158, %p159
      %p161 = scmp.le.s32.totalorder 1, %s12
      %p162 = scmp.lt.s32.totalorder %s12, 3
      %p163 = pnand %p161, %p162
      %p164 = pneg %p163
      // Predicated region
      $region9: #{phase_network_forward.1} parent=5 // pred_check
        _
      $region10: #{phase_network_forward.1} parent=5 // pred_check_branch
        %166 = sbr.rel (%p163) target = $region12
      $region11: #{phase_network_forward.1} parent=5 // pred_region
        %s167 = ssub.s32 %s12, 1
        // Predicated region
        $region13: #{phase_network_forward.1} parent=11 // pred_check
          %p168 = pneg %p59
        $region14: #{phase_network_forward.1} parent=11 // pred_check_branch
          %170 = sbr.rel (%p168) target = $region16
        $region15: #{phase_network_forward.1} parent=11 // pred_region
          _
        $region16: #{phase_network_forward.1} parent=11 // pred_fallthru
          _
        // Predicated region
        $region17: #{phase_network_forward.1} parent=11 // pred_check
          %p171 = pneg %p80
        $region18: #{phase_network_forward.1} parent=11 // pred_check_branch
          %173 = sbr.rel (%p171) target = $region20
        $region19: #{phase_network_forward.1} parent=11 // pred_region
          _
        $region20: #{phase_network_forward.1} parent=11 // pred_fallthru
          _
        // Predicated region
        $region21: #{phase_network_forward.1} parent=11 // pred_check
          %p174 = pneg %p101
        $region22: #{phase_network_forward.1} parent=11 // pred_check_branch
          %176 = sbr.rel (%p174) target = $region24
        $region23: #{phase_network_forward.1} parent=11 // pred_region
          _
        $region24: #{phase_network_forward.1} parent=11 // pred_fallthru
          _
      $region12: #{phase_network_forward.1} parent=5 // pred_fallthru
        _
      %p177 = scmp.lt.s32.totalorder %s12, 2
      // Predicated region
      $region25: #{phase_network_forward.1} parent=5 // pred_check
        %p178 = pneg %p177
      $region26: #{phase_network_forward.1} parent=5 // pred_check_branch
        %180 = sbr.rel (%p178) target = $region28
      $region27: #{phase_network_forward.1} parent=5 // pred_region
        // Predicated region
        $region29: #{phase_network_forward.1} parent=27 // pred_check
          %p181 = pneg %p32
        $region30: #{phase_network_forward.1} parent=27 // pred_check_branch
          %183 = sbr.rel (%p181) target = $region32
        $region31: #{phase_network_forward.1} parent=27 // pred_region
          %s184 = sand.u32 %s22, 1
          %s185 = sand.u32 %s22, 1
          %s186 = smul.addr %s185, 64
          %s187 = scalar_lea.vmem [#allocation2], %s186
          %s188 = smul.u32 2, %s12
          %s189 = smul.addr %s188, 8
          %s190 = scalar_lea.vmem %s0, %s189
          // Predicated region
          $region33: #{phase_network_forward.1} parent=31 // pred_check
            _
          $region34: #{phase_network_forward.1} parent=31 // pred_check_branch
            %192 = sbr.rel (0) target = $region36
          $region35: #{phase_network_forward.1} parent=31 // pred_region
            // Predicated region
            $region37: #{phase_network_forward.1} parent=35 // pred_check
              _
            $region38: #{phase_network_forward.1} parent=35 // pred_check_branch
              %194 = sbr.rel (0) target = $region40
            $region39: #{phase_network_forward.1} parent=35 // pred_region
              loop: start=0, step=1, limit=1
              $region41: #{phase_network_forward.1} parent=39 // loop_pre_header
                _
              $region42: #{phase_network_forward.1} parent=39 // loop_header
                %s196 = sphi 0, %s200
                %p197 = scmp.ge.s32.totalorder %s196, 1
                %s201 = sphi %s190, %s190
                %s202 = sphi %s187, %s187
              $region43: #{phase_network_forward.1} parent=39 // loop_header_branch
                %199 = sbr.rel (%p197) target = $region47
              $region44: #{phase_network_forward.1} parent=39 // loop_body
                %v203 = vld [vmem:[%s201] sm:$0xff]
                %204 = vst [vmem:[%s202] sm:$0xff] %v203
                %v205 = vld [vmem:[%s201 + $0x8] sm:$0xff]
                %206 = vst [vmem:[%s202 + $0x8] sm:$0xff] %v205
                %v207 = vld [vmem:[%s201 + $0x20] sm:$0xff]
                %208 = vst [vmem:[%s202 + $0x10] sm:$0xff] %v207
                %v209 = vld [vmem:[%s201 + $0x28] sm:$0xff]
                %210 = vst [vmem:[%s202 + $0x18] sm:$0xff] %v209
                %v211 = vld [vmem:[%s201 + $0x40] sm:$0xff]
                %212 = vst [vmem:[%s202 + $0x20] sm:$0xff] %v211
                %v213 = vld [vmem:[%s201 + $0x48] sm:$0xff]
                %214 = vst [vmem:[%s202 + $0x28] sm:$0xff] %v213
                %v215 = vld [vmem:[%s201 + $0x60] sm:$0xff]
                %216 = vst [vmem:[%s202 + $0x30] sm:$0xff] %v215
                %v217 = vld [vmem:[%s201 + $0x68] sm:$0xff]
                %218 = vst [vmem:[%s202 + $0x38] sm:$0xff] %v217
              $region45: #{phase_network_forward.1} parent=39 // loop_footer
                %s200 = sadd.s32 1, %s196
              $region46: #{phase_network_forward.1} parent=39 // loop_footer_branch
                %195 = sbr.rel target = $region42
              $region47: #{phase_network_forward.1} parent=39 // loop_exit
                _
            $region40: #{phase_network_forward.1} parent=35 // pred_fallthru
              _
            // Predicated region
            $region48: #{phase_network_forward.1} parent=35 // pred_check
              _
            $region49: #{phase_network_forward.1} parent=35 // pred_check_branch
              %220 = sbr.rel target = $region51
            $region50: #{phase_network_forward.1} parent=35 // pred_region
              _
            $region51: #{phase_network_forward.1} parent=35 // pred_fallthru
              _
          $region36: #{phase_network_forward.1} parent=31 // pred_fallthru
            _
          %221 = vnop
        $region32: #{phase_network_forward.1} parent=27 // pred_fallthru
          _
      $region28: #{phase_network_forward.1} parent=5 // pred_fallthru
        _
      %p222 = scmp.le.s32.totalorder 1, %s12
      %p223 = scmp.lt.s32.totalorder %s12, 3
      %p224 = pnand %p222, %p223
      %p225 = pneg %p224
      // Predicated region
      $region52: #{phase_network_forward.1} parent=5 // pred_check
        _
      $region53: #{phase_network_forward.1} parent=5 // pred_check_branch
        %227 = sbr.rel (%p224) target = $region55
      $region54: #{phase_network_forward.1} parent=5 // pred_region
        %s228 = ssub.s32 %s12, 1
        %s229 = sand.u32 %s25, 1
        %s230 = sand.u32 %s25, 1
        %s231 = smul.addr %s230, 64
        %s232 = scalar_lea.vmem [#allocation2], %s231
        // Predicated region
        $region56: #{phase_network_forward.1} parent=54 // pred_check
          %p233 = pneg %p38
        $region57: #{phase_network_forward.1} parent=54 // pred_check_branch
          %235 = sbr.rel (%p233) target = $region59
        $region58: #{phase_network_forward.1} parent=54 // pred_region
          _
        $region59: #{phase_network_forward.1} parent=54 // pred_fallthru
          _
        %s236 = sand.u32 %s25, 1
        %s237 = sand.u32 %s25, 1
        %s238 = smul.addr %s237, 64
        %s239 = scalar_lea.vmem [#allocation2], %s238
        %p240 = pneg %p38
        %p241 = pneg %p35
        %p242 = pneg %p59
        %p243 = pneg %p56
        %p244 = pneg %p80
        %p245 = pneg %p77
        %p246 = pneg %p101
        %p247 = pneg %p98
        %p248 = pneg %p127
        %p249 = pneg %p124
        %s250 = smul.u32 2, %s17
        %p251 = scmp.lt.s32.totalorder %s250, 3
        %s252 = scalar_select %p251, %s250, 3
        %s253 = smul.addr %s252, 2
        %s254 = scalar_lea.vmem %s4, %s253
        %p255 = pneg %p153
        %p256 = pneg %p150
        %s257 = smul.u32 2, %s17
        %p258 = scmp.lt.s32.totalorder %s257, 3
        %s259 = scalar_select %p258, %s257, 3
        %s260 = smul.addr %s259, 2
        %s261 = scalar_lea.vmem %s5, %s260
        %s262 = smul.u32 2, %s17
        %s263 = smul.u32 2, %s17
        %p264 = scmp.lt.s32.totalorder %s263, 3
        %s265 = scalar_select %p264, %s263, 3
        %s266 = smul.addr %s265, 2
        %s267 = scalar_lea.vmem %s4, %s266
        %s268 = smul.u32 2, %s17
        %s269 = smul.u32 2, %s17
        %p270 = scmp.lt.s32.totalorder %s269, 3
        %s271 = scalar_select %p270, %s269, 3
        %s272 = smul.addr %s271, 2
        %s273 = scalar_lea.vmem %s5, %s272
        %s274 = smul.u32 2, %s17
        %v275 = vld [vmem:[%s1] sm:$0xff]
        %v276 = vld [vmem:[%s1 + $0x8] sm:$0xff]
        %v277 = vld [vmem:[%s1 + $0x10] sm:$0xff]
        %v278 = vld [vmem:[%s1 + $0x18] sm:$0xff]
        %v279 = vld [vmem:[%s232] sm:$0xff]
        %v280 = vld [vmem:[%s232 + $0x8] sm:$0xff]
        %v281 = vld [vmem:[%s232 + $0x10] sm:$0xff]
        %v282 = vld [vmem:[%s232 + $0x18] sm:$0xff]
        %v283 = vld [vmem:[%s232 + $0x20] sm:$0xff]
        %v284 = vld [vmem:[%s232 + $0x28] sm:$0xff]
        %v285 = vld [vmem:[%s232 + $0x30] sm:$0xf]
        %v286 = vld [vmem:[%s232 + $0x38] sm:$0xf]
        %v287 = vld [vmem:[%s3] sm:$0xff]
        %v288 = vld [vmem:[%s3 + $0x8] sm:$0xff]
        %v289 = vld [vmem:[%s3 + $0x10] sm:$0xff]
        %v290 = vld [vmem:[%s3 + $0x18] sm:$0xff]
        %292 = vset.pattern.permute.xlu0 0
        %293 = vperm.xlu0 %292, %v287
        %v294 = vpop.permute.xlu0 %293
        %297 = vset.pattern.permute.xlu0 0
        %298 = vperm.xlu0 %297, %v288
        %v299 = vpop.permute.xlu0 %298
        %302 = vset.pattern.permute.xlu0 0
        %303 = vperm.xlu0 %302, %v289
        %v304 = vpop.permute.xlu0 %303
        %307 = vset.pattern.permute.xlu0 0
        %308 = vperm.xlu0 %307, %v290
        %v309 = vpop.permute.xlu0 %308
        %vm311 = vcmask 228352
        %v313 = vsel %vm311, %v275, 0
        %v316 = vsel %vm311, %v276, 0
        %v319 = vsel %vm311, %v277, 0
        %v322 = vsel %vm311, %v278, 0
        %vm324 = vcmask 1043456
        %v326 = vsel %vm324, %v285, 0
        %v329 = vsel %vm324, %v286, 0
        %331 = vmatprep.subr.mxu0 0.0
        %332 = vmatpush1.msra.mxu0 0.0
        %333 = vmatprep.subr.mxu0 0.0
        %334 = vmatpush1.msra.mxu0 0.0
        %335 = vmatprep.subr.mxu0 0.0
        %336 = vmatpush1.msra.mxu0 0.0
        %337 = vmatprep.subr.mxu0 0.0
        %338 = vmatpush1.msra.mxu0 0.0
        %339 = vmatprep.subr.mxu0 0.0
        %340 = vmatpush1.msra.mxu0 0.0
        %341 = vmatprep.subr.mxu0 0.0
        %342 = vmatpush1.msra.mxu0 0.0
        %343 = vmatprep.subr.mxu0 0.0
        %344 = vmatpush1.msra.mxu0 0.0
        %345 = vmatprep.subr.mxu0 0.0
        %346 = vmatpush1.msra.mxu0 0.0
        %347 = vmatprep.subr.mxu0 0.0
        %348 = vmatpush1.msra.mxu0 0.0
        %349 = vmatprep.subr.mxu0 0.0
        %350 = vmatpush1.msra.mxu0 0.0
        %351 = vmatprep.subr.mxu0 0.0
        %352 = vmatpush1.msra.mxu0 0.0
        %353 = vmatprep.subr.mxu0 0.0
        %354 = vmatpush1.msra.mxu0 0.0
        %355 = vmatprep.subr.mxu0 %v329
        %356 = vmatpush1.msra.mxu0 %v326
        %357 = vmatprep.subr.mxu0 %v284
        %358 = vmatpush1.msra.mxu0 %v283
        %359 = vmatprep.subr.mxu0 %v282
        %360 = vmatpush1.msra.mxu0 %v281
        %361 = vmatprep.subr.mxu0 %v280
        %362 = vmatpush1.msra.mxu0 %v279
        %363 = vmatprep.subr.mxu0 0.0
        %364 = vmatpush2.msra.mxu0 0.0
        %365 = vmatprep.subr.mxu0 0.0
        %366 = vmatpush2.msra.mxu0 0.0
        %367 = vmatprep.subr.mxu0 0.0
        %368 = vmatpush2.msra.mxu0 0.0
        %369 = vmatprep.subr.mxu0 0.0
        %370 = vmatpush2.msra.mxu0 0.0
        %371 = vmatprep.subr.mxu0 0.0
        %372 = vmatpush2.msra.mxu0 0.0
        %373 = vmatprep.subr.mxu0 0.0
        %374 = vmatpush2.msra.mxu0 0.0
        %375 = vmatprep.subr.mxu0 0.0
        %376 = vmatpush2.msra.mxu0 0.0
        %377 = vmatprep.subr.mxu0 0.0
        %378 = vmatpush2.msra.mxu0 0.0
        %379 = vmatprep.subr.mxu0 0.0
        %380 = vmatpush2.msra.mxu0 0.0
        %381 = vmatprep.subr.mxu0 0.0
        %382 = vmatpush2.msra.mxu0 0.0
        %383 = vmatprep.subr.mxu0 0.0
        %384 = vmatpush2.msra.mxu0 0.0
        %385 = vmatprep.subr.mxu0 0.0
        %386 = vmatpush2.msra.mxu0 0.0
        %387 = vmatprep.subr.mxu0 0.0
        %388 = vmatpush2.msra.mxu0 0.0
        %389 = vmatprep.subr.mxu0 0.0
        %390 = vmatpush2.msra.mxu0 0.0
        %391 = vmatprep.subr.mxu0 0.0
        %392 = vmatpush2.msra.mxu0 0.0
        %393 = vmatprep.subr.mxu0 0.0
        %394 = vmatpush2.msra.mxu0 0.0
        %395 = vmatprep.mubr.f32.mxu0 0.0
        %396 = vmatmul.mubr.f32.gmra.mxu0 %v313
        %v397 = vpop.f32.mrf.mxu0
        %v398 = vadd.f32 %v294, %v397
        %v399 = vpop.f32.mrf.mxu0
        %v400 = vadd.f32 %v294, %v399
        %401 = vmatprep.mubr.f32.mxu0 0.0
        %402 = vmatmul.mubr.f32.gmra.mxu0 %v316
        %v403 = vpop.f32.mrf.mxu0
        %v404 = vadd.f32 %v299, %v403
        %v405 = vpop.f32.mrf.mxu0
        %v406 = vadd.f32 %v299, %v405
        %407 = vmatprep.mubr.f32.mxu0 0.0
        %408 = vmatmul.mubr.f32.gmra.mxu0 %v319
        %v409 = vpop.f32.mrf.mxu0
        %v410 = vadd.f32 %v304, %v409
        %v411 = vpop.f32.mrf.mxu0
        %v412 = vadd.f32 %v304, %v411
        %413 = vmatprep.mubr.f32.mxu0 0.0
        %414 = vmatmul.mubr.f32.gmra.mxu0 %v322
        %v415 = vpop.f32.mrf.mxu0
        %v416 = vadd.f32 %v309, %v415
        %v417 = vpop.f32.mrf.mxu0
        %v418 = vadd.f32 %v309, %v417
        %419 = vdwg.mxu0
        %v420 = vtanh.pop %v398
        %v421 = vtanh.pop %v400
        %v422 = vtanh.pop %v404
        %v423 = vtanh.pop %v406
        %v424 = vtanh.pop %v410
        %v425 = vtanh.pop %v412
        %v426 = vtanh.pop %v416
        %v427 = vtanh.pop %v418
        %v428 = vld [vmem:[%s2] sm:$0xff]
        %v429 = vld [vmem:[%s2 + $0x8] sm:$0xff]
        %v430 = vld [vmem:[%s2 + $0x10] sm:$0xff]
        %v431 = vld [vmem:[%s2 + $0x18] sm:$0xff]
        %s432 = scalar_lea.vmem %s3, 32
        %v433 = vld [vmem:[%s432] sm:$0xff]
        %v434 = vld [vmem:[%s432 + $0x8] sm:$0xff]
        %v435 = vld [vmem:[%s432 + $0x10] sm:$0xff]
        %v436 = vld [vmem:[%s432 + $0x18] sm:$0xff]
        %438 = vset.pattern.permute.xlu0 0
        %439 = vperm.xlu0 %438, %v433
        %v440 = vpop.permute.xlu0 %439
        %443 = vset.pattern.permute.xlu0 0
        %444 = vperm.xlu0 %443, %v434
        %v445 = vpop.permute.xlu0 %444
        %448 = vset.pattern.permute.xlu0 0
        %449 = vperm.xlu0 %448, %v435
        %v450 = vpop.permute.xlu0 %449
        %453 = vset.pattern.permute.xlu0 0
        %454 = vperm.xlu0 %453, %v436
        %v455 = vpop.permute.xlu0 %454
        %vm457 = vcmask 261120
        %v459 = vsel %vm457, %v428, 0
        %v462 = vsel %vm457, %v429, 0
        %v465 = vsel %vm457, %v430, 0
        %v468 = vsel %vm457, %v431, 0
        %470 = vmatprep.subr.mxu0 0.0
        %471 = vmatpush1.msra.mxu0 0.0
        %472 = vmatprep.subr.mxu0 0.0
        %473 = vmatpush1.msra.mxu0 0.0
        %474 = vmatprep.subr.mxu0 0.0
        %475 = vmatpush1.msra.mxu0 0.0
        %476 = vmatprep.subr.mxu0 0.0
        %477 = vmatpush1.msra.mxu0 0.0
        %478 = vmatprep.subr.mxu0 0.0
        %479 = vmatpush1.msra.mxu0 0.0
        %480 = vmatprep.subr.mxu0 0.0
        %481 = vmatpush1.msra.mxu0 0.0
        %482 = vmatprep.subr.mxu0 0.0
        %483 = vmatpush1.msra.mxu0 0.0
        %484 = vmatprep.subr.mxu0 0.0
        %485 = vmatpush1.msra.mxu0 0.0
        %486 = vmatprep.subr.mxu0 0.0
        %487 = vmatpush1.msra.mxu0 0.0
        %488 = vmatprep.subr.mxu0 0.0
        %489 = vmatpush1.msra.mxu0 0.0
        %490 = vmatprep.subr.mxu0 0.0
        %491 = vmatpush1.msra.mxu0 0.0
        %492 = vmatprep.subr.mxu0 0.0
        %493 = vmatpush1.msra.mxu0 0.0
        %494 = vmatprep.subr.mxu0 %v427
        %495 = vmatpush1.msra.mxu0 %v426
        %496 = vmatprep.subr.mxu0 %v425
        %497 = vmatpush1.msra.mxu0 %v424
        %498 = vmatprep.subr.mxu0 %v423
        %499 = vmatpush1.msra.mxu0 %v422
        %500 = vmatprep.subr.mxu0 %v421
        %501 = vmatpush1.msra.mxu0 %v420
        %502 = vmatprep.subr.mxu0 0.0
        %503 = vmatpush2.msra.mxu0 0.0
        %504 = vmatprep.subr.mxu0 0.0
        %505 = vmatpush2.msra.mxu0 0.0
        %506 = vmatprep.subr.mxu0 0.0
        %507 = vmatpush2.msra.mxu0 0.0
        %508 = vmatprep.subr.mxu0 0.0
        %509 = vmatpush2.msra.mxu0 0.0
        %510 = vmatprep.subr.mxu0 0.0
        %511 = vmatpush2.msra.mxu0 0.0
        %512 = vmatprep.subr.mxu0 0.0
        %513 = vmatpush2.msra.mxu0 0.0
        %514 = vmatprep.subr.mxu0 0.0
        %515 = vmatpush2.msra.mxu0 0.0
        %516 = vmatprep.subr.mxu0 0.0
        %517 = vmatpush2.msra.mxu0 0.0
        %518 = vmatprep.subr.mxu0 0.0
        %519 = vmatpush2.msra.mxu0 0.0
        %520 = vmatprep.subr.mxu0 0.0
        %521 = vmatpush2.msra.mxu0 0.0
        %522 = vmatprep.subr.mxu0 0.0
        %523 = vmatpush2.msra.mxu0 0.0
        %524 = vmatprep.subr.mxu0 0.0
        %525 = vmatpush2.msra.mxu0 0.0
        %526 = vmatprep.subr.mxu0 0.0
        %527 = vmatpush2.msra.mxu0 0.0
        %528 = vmatprep.subr.mxu0 0.0
        %529 = vmatpush2.msra.mxu0 0.0
        %530 = vmatprep.subr.mxu0 0.0
        %531 = vmatpush2.msra.mxu0 0.0
        %532 = vmatprep.subr.mxu0 0.0
        %533 = vmatpush2.msra.mxu0 0.0
        %534 = vmatprep.mubr.f32.mxu0 0.0
        %535 = vmatmul.mubr.f32.gmra.mxu0 %v459
        %v536 = vpop.f32.mrf.mxu0
        %v537 = vadd.f32 %v440, %v536
        %v538 = vpop.f32.mrf.mxu0
        %v539 = vadd.f32 %v440, %v538
        %540 = vmatprep.mubr.f32.mxu0 0.0
        %541 = vmatmul.mubr.f32.gmra.mxu0 %v462
        %v542 = vpop.f32.mrf.mxu0
        %v543 = vadd.f32 %v445, %v542
        %v544 = vpop.f32.mrf.mxu0
        %v545 = vadd.f32 %v445, %v544
        %546 = vmatprep.mubr.f32.mxu0 0.0
        %547 = vmatmul.mubr.f32.gmra.mxu0 %v465
        %v548 = vpop.f32.mrf.mxu0
        %v549 = vadd.f32 %v450, %v548
        %v550 = vpop.f32.mrf.mxu0
        %v551 = vadd.f32 %v450, %v550
        %552 = vmatprep.mubr.f32.mxu0 0.0
        %553 = vmatmul.mubr.f32.gmra.mxu0 %v468
        %v554 = vpop.f32.mrf.mxu0
        %v555 = vadd.f32 %v455, %v554
        %v556 = vpop.f32.mrf.mxu0
        %v557 = vadd.f32 %v455, %v556
        %558 = vdwg.mxu0
        %v559 = vtanh.pop %v537
        %v560 = vtanh.pop %v539
        %v561 = vtanh.pop %v543
        %v562 = vtanh.pop %v545
        %v563 = vtanh.pop %v549
        %v564 = vtanh.pop %v551
        %v565 = vtanh.pop %v555
        %v566 = vtanh.pop %v557
        %s567 = scalar_lea.vmem %s2, 32
        %v568 = vld [vmem:[%s567] sm:$0xff]
        %v569 = vld [vmem:[%s567 + $0x8] sm:$0xff]
        %v570 = vld [vmem:[%s567 + $0x10] sm:$0xff]
        %v571 = vld [vmem:[%s567 + $0x18] sm:$0xff]
        %s572 = scalar_lea.vmem %s3, 64
        %v573 = vld [vmem:[%s572] sm:$0xff]
        %v574 = vld [vmem:[%s572 + $0x8] sm:$0xff]
        %v575 = vld [vmem:[%s572 + $0x10] sm:$0xff]
        %v576 = vld [vmem:[%s572 + $0x18] sm:$0xff]
        %578 = vset.pattern.permute.xlu0 0
        %579 = vperm.xlu0 %578, %v573
        %v580 = vpop.permute.xlu0 %579
        %583 = vset.pattern.permute.xlu0 0
        %584 = vperm.xlu0 %583, %v574
        %v585 = vpop.permute.xlu0 %584
        %588 = vset.pattern.permute.xlu0 0
        %589 = vperm.xlu0 %588, %v575
        %v590 = vpop.permute.xlu0 %589
        %593 = vset.pattern.permute.xlu0 0
        %594 = vperm.xlu0 %593, %v576
        %v595 = vpop.permute.xlu0 %594
        %v598 = vsel %vm457, %v568, 0
        %v601 = vsel %vm457, %v569, 0
        %v604 = vsel %vm457, %v570, 0
        %v607 = vsel %vm457, %v571, 0
        %609 = vmatprep.subr.mxu0 0.0
        %610 = vmatpush1.msra.mxu0 0.0
        %611 = vmatprep.subr.mxu0 0.0
        %612 = vmatpush1.msra.mxu0 0.0
        %613 = vmatprep.subr.mxu0 0.0
        %614 = vmatpush1.msra.mxu0 0.0
        %615 = vmatprep.subr.mxu0 0.0
        %616 = vmatpush1.msra.mxu0 0.0
        %617 = vmatprep.subr.mxu0 0.0
        %618 = vmatpush1.msra.mxu0 0.0
        %619 = vmatprep.subr.mxu0 0.0
        %620 = vmatpush1.msra.mxu0 0.0
        %621 = vmatprep.subr.mxu0 0.0
        %622 = vmatpush1.msra.mxu0 0.0
        %623 = vmatprep.subr.mxu0 0.0
        %624 = vmatpush1.msra.mxu0 0.0
        %625 = vmatprep.subr.mxu0 0.0
        %626 = vmatpush1.msra.mxu0 0.0
        %627 = vmatprep.subr.mxu0 0.0
        %628 = vmatpush1.msra.mxu0 0.0
        %629 = vmatprep.subr.mxu0 0.0
        %630 = vmatpush1.msra.mxu0 0.0
        %631 = vmatprep.subr.mxu0 0.0
        %632 = vmatpush1.msra.mxu0 0.0
        %633 = vmatprep.subr.mxu0 %v566
        %634 = vmatpush1.msra.mxu0 %v565
        %635 = vmatprep.subr.mxu0 %v564
        %636 = vmatpush1.msra.mxu0 %v563
        %637 = vmatprep.subr.mxu0 %v562
        %638 = vmatpush1.msra.mxu0 %v561
        %639 = vmatprep.subr.mxu0 %v560
        %640 = vmatpush1.msra.mxu0 %v559
        %641 = vmatprep.subr.mxu0 0.0
        %642 = vmatpush2.msra.mxu0 0.0
        %643 = vmatprep.subr.mxu0 0.0
        %644 = vmatpush2.msra.mxu0 0.0
        %645 = vmatprep.subr.mxu0 0.0
        %646 = vmatpush2.msra.mxu0 0.0
        %647 = vmatprep.subr.mxu0 0.0
        %648 = vmatpush2.msra.mxu0 0.0
        %649 = vmatprep.subr.mxu0 0.0
        %650 = vmatpush2.msra.mxu0 0.0
        %651 = vmatprep.subr.mxu0 0.0
        %652 = vmatpush2.msra.mxu0 0.0
        %653 = vmatprep.subr.mxu0 0.0
        %654 = vmatpush2.msra.mxu0 0.0
        %655 = vmatprep.subr.mxu0 0.0
        %656 = vmatpush2.msra.mxu0 0.0
        %657 = vmatprep.subr.mxu0 0.0
        %658 = vmatpush2.msra.mxu0 0.0
        %659 = vmatprep.subr.mxu0 0.0
        %660 = vmatpush2.msra.mxu0 0.0
        %661 = vmatprep.subr.mxu0 0.0
        %662 = vmatpush2.msra.mxu0 0.0
        %663 = vmatprep.subr.mxu0 0.0
        %664 = vmatpush2.msra.mxu0 0.0
        %665 = vmatprep.subr.mxu0 0.0
        %666 = vmatpush2.msra.mxu0 0.0
        %667 = vmatprep.subr.mxu0 0.0
        %668 = vmatpush2.msra.mxu0 0.0
        %669 = vmatprep.subr.mxu0 0.0
        %670 = vmatpush2.msra.mxu0 0.0
        %671 = vmatprep.subr.mxu0 0.0
        %672 = vmatpush2.msra.mxu0 0.0
        %673 = vmatprep.mubr.f32.mxu0 0.0
        %674 = vmatmul.mubr.f32.gmra.mxu0 %v598
        %v675 = vpop.f32.mrf.mxu0
        %v676 = vadd.f32 %v580, %v675
        %v677 = vpop.f32.mrf.mxu0
        %v678 = vadd.f32 %v580, %v677
        %679 = vmatprep.mubr.f32.mxu0 0.0
        %680 = vmatmul.mubr.f32.gmra.mxu0 %v601
        %v681 = vpop.f32.mrf.mxu0
        %v682 = vadd.f32 %v585, %v681
        %v683 = vpop.f32.mrf.mxu0
        %v684 = vadd.f32 %v585, %v683
        %685 = vmatprep.mubr.f32.mxu0 0.0
        %686 = vmatmul.mubr.f32.gmra.mxu0 %v604
        %v687 = vpop.f32.mrf.mxu0
        %v688 = vadd.f32 %v590, %v687
        %v689 = vpop.f32.mrf.mxu0
        %v690 = vadd.f32 %v590, %v689
        %691 = vmatprep.mubr.f32.mxu0 0.0
        %692 = vmatmul.mubr.f32.gmra.mxu0 %v607
        %v693 = vpop.f32.mrf.mxu0
        %v694 = vadd.f32 %v595, %v693
        %v695 = vpop.f32.mrf.mxu0
        %v696 = vadd.f32 %v595, %v695
        %697 = vdwg.mxu0
        %v698 = vtanh.pop %v676
        %v699 = vtanh.pop %v678
        %v700 = vtanh.pop %v682
        %v701 = vtanh.pop %v684
        %v702 = vtanh.pop %v688
        %v703 = vtanh.pop %v690
        %v704 = vtanh.pop %v694
        %v705 = vtanh.pop %v696
        %s706 = scalar_lea.vmem %s2, 64
        %v707 = vld [vmem:[%s706] sm:$0xff]
        %v708 = vld [vmem:[%s706 + $0x8] sm:$0xff]
        %v709 = vld [vmem:[%s706 + $0x10] sm:$0xff]
        %v710 = vld [vmem:[%s706 + $0x18] sm:$0xff]
        %s711 = scalar_lea.vmem %s3, 96
        %v712 = vld [vmem:[%s711] sm:$0xff]
        %v713 = vld [vmem:[%s711 + $0x8] sm:$0xff]
        %v714 = vld [vmem:[%s711 + $0x10] sm:$0xff]
        %v715 = vld [vmem:[%s711 + $0x18] sm:$0xff]
        %717 = vset.pattern.permute.xlu0 0
        %718 = vperm.xlu0 %717, %v712
        %v719 = vpop.permute.xlu0 %718
        %722 = vset.pattern.permute.xlu0 0
        %723 = vperm.xlu0 %722, %v713
        %v724 = vpop.permute.xlu0 %723
        %727 = vset.pattern.permute.xlu0 0
        %728 = vperm.xlu0 %727, %v714
        %v729 = vpop.permute.xlu0 %728
        %732 = vset.pattern.permute.xlu0 0
        %733 = vperm.xlu0 %732, %v715
        %v734 = vpop.permute.xlu0 %733
        %v737 = vsel %vm457, %v707, 0
        %v740 = vsel %vm457, %v708, 0
        %v743 = vsel %vm457, %v709, 0
        %v746 = vsel %vm457, %v710, 0
        %748 = vmatprep.subr.mxu0 0.0
        %749 = vmatpush1.msra.mxu0 0.0
        %750 = vmatprep.subr.mxu0 0.0
        %751 = vmatpush1.msra.mxu0 0.0
        %752 = vmatprep.subr.mxu0 0.0
        %753 = vmatpush1.msra.mxu0 0.0
        %754 = vmatprep.subr.mxu0 0.0
        %755 = vmatpush1.msra.mxu0 0.0
        %756 = vmatprep.subr.mxu0 0.0
        %757 = vmatpush1.msra.mxu0 0.0
        %758 = vmatprep.subr.mxu0 0.0
        %759 = vmatpush1.msra.mxu0 0.0
        %760 = vmatprep.subr.mxu0 0.0
        %761 = vmatpush1.msra.mxu0 0.0
        %762 = vmatprep.subr.mxu0 0.0
        %763 = vmatpush1.msra.mxu0 0.0
        %764 = vmatprep.subr.mxu0 0.0
        %765 = vmatpush1.msra.mxu0 0.0
        %766 = vmatprep.subr.mxu0 0.0
        %767 = vmatpush1.msra.mxu0 0.0
        %768 = vmatprep.subr.mxu0 0.0
        %769 = vmatpush1.msra.mxu0 0.0
        %770 = vmatprep.subr.mxu0 0.0
        %771 = vmatpush1.msra.mxu0 0.0
        %772 = vmatprep.subr.mxu0 %v705
        %773 = vmatpush1.msra.mxu0 %v704
        %774 = vmatprep.subr.mxu0 %v703
        %775 = vmatpush1.msra.mxu0 %v702
        %776 = vmatprep.subr.mxu0 %v701
        %777 = vmatpush1.msra.mxu0 %v700
        %778 = vmatprep.subr.mxu0 %v699
        %779 = vmatpush1.msra.mxu0 %v698
        %780 = vmatprep.subr.mxu0 0.0
        %781 = vmatpush2.msra.mxu0 0.0
        %782 = vmatprep.subr.mxu0 0.0
        %783 = vmatpush2.msra.mxu0 0.0
        %784 = vmatprep.subr.mxu0 0.0
        %785 = vmatpush2.msra.mxu0 0.0
        %786 = vmatprep.subr.mxu0 0.0
        %787 = vmatpush2.msra.mxu0 0.0
        %788 = vmatprep.subr.mxu0 0.0
        %789 = vmatpush2.msra.mxu0 0.0
        %790 = vmatprep.subr.mxu0 0.0
        %791 = vmatpush2.msra.mxu0 0.0
        %792 = vmatprep.subr.mxu0 0.0
        %793 = vmatpush2.msra.mxu0 0.0
        %794 = vmatprep.subr.mxu0 0.0
        %795 = vmatpush2.msra.mxu0 0.0
        %796 = vmatprep.subr.mxu0 0.0
        %797 = vmatpush2.msra.mxu0 0.0
        %798 = vmatprep.subr.mxu0 0.0
        %799 = vmatpush2.msra.mxu0 0.0
        %800 = vmatprep.subr.mxu0 0.0
        %801 = vmatpush2.msra.mxu0 0.0
        %802 = vmatprep.subr.mxu0 0.0
        %803 = vmatpush2.msra.mxu0 0.0
        %804 = vmatprep.subr.mxu0 0.0
        %805 = vmatpush2.msra.mxu0 0.0
        %806 = vmatprep.subr.mxu0 0.0
        %807 = vmatpush2.msra.mxu0 0.0
        %808 = vmatprep.subr.mxu0 0.0
        %809 = vmatpush2.msra.mxu0 0.0
        %810 = vmatprep.subr.mxu0 0.0
        %811 = vmatpush2.msra.mxu0 0.0
        %812 = vmatprep.mubr.f32.mxu0 0.0
        %813 = vmatmul.mubr.f32.gmra.mxu0 %v737
        %v814 = vpop.f32.mrf.mxu0
        %v815 = vadd.f32 %v719, %v814
        %v816 = vpop.f32.mrf.mxu0
        %v817 = vadd.f32 %v719, %v816
        %818 = vmatprep.mubr.f32.mxu0 0.0
        %819 = vmatmul.mubr.f32.gmra.mxu0 %v740
        %v820 = vpop.f32.mrf.mxu0
        %v821 = vadd.f32 %v724, %v820
        %v822 = vpop.f32.mrf.mxu0
        %v823 = vadd.f32 %v724, %v822
        %824 = vmatprep.mubr.f32.mxu0 0.0
        %825 = vmatmul.mubr.f32.gmra.mxu0 %v743
        %v826 = vpop.f32.mrf.mxu0
        %v827 = vadd.f32 %v729, %v826
        %v828 = vpop.f32.mrf.mxu0
        %v829 = vadd.f32 %v729, %v828
        %830 = vmatprep.mubr.f32.mxu0 0.0
        %831 = vmatmul.mubr.f32.gmra.mxu0 %v746
        %v832 = vpop.f32.mrf.mxu0
        %v833 = vadd.f32 %v734, %v832
        %v834 = vpop.f32.mrf.mxu0
        %v835 = vadd.f32 %v734, %v834
        %836 = vdwg.mxu0
        %v837 = vtanh.pop %v815
        %v838 = vtanh.pop %v817
        %v839 = vtanh.pop %v821
        %v840 = vtanh.pop %v823
        %v841 = vtanh.pop %v827
        %v842 = vtanh.pop %v829
        %v843 = vtanh.pop %v833
        %v844 = vtanh.pop %v835
        %s845 = scalar_lea.vmem %s2, 96
        %v846 = vld [vmem:[%s845] sm:$0xff]
        %v847 = vld [vmem:[%s845 + $0x8] sm:$0xff]
        %v848 = vld [vmem:[%s845 + $0x10] sm:$0xff]
        %v849 = vld [vmem:[%s845 + $0x18] sm:$0xff]
        %s850 = scalar_lea.vmem %s3, 128
        %v851 = vld [vmem:[%s850] sm:$0xff]
        %v852 = vld [vmem:[%s850 + $0x8] sm:$0xff]
        %v853 = vld [vmem:[%s850 + $0x10] sm:$0xff]
        %v854 = vld [vmem:[%s850 + $0x18] sm:$0xff]
        %856 = vset.pattern.permute.xlu0 0
        %857 = vperm.xlu0 %856, %v851
        %v858 = vpop.permute.xlu0 %857
        %861 = vset.pattern.permute.xlu0 0
        %862 = vperm.xlu0 %861, %v852
        %v863 = vpop.permute.xlu0 %862
        %866 = vset.pattern.permute.xlu0 0
        %867 = vperm.xlu0 %866, %v853
        %v868 = vpop.permute.xlu0 %867
        %871 = vset.pattern.permute.xlu0 0
        %872 = vperm.xlu0 %871, %v854
        %v873 = vpop.permute.xlu0 %872
        %v876 = vsel %vm457, %v846, 0
        %v879 = vsel %vm457, %v847, 0
        %v882 = vsel %vm457, %v848, 0
        %v885 = vsel %vm457, %v849, 0
        %887 = vmatprep.subr.mxu0 0.0
        %888 = vmatpush1.msra.mxu0 0.0
        %889 = vmatprep.subr.mxu0 0.0
        %890 = vmatpush1.msra.mxu0 0.0
        %891 = vmatprep.subr.mxu0 0.0
        %892 = vmatpush1.msra.mxu0 0.0
        %893 = vmatprep.subr.mxu0 0.0
        %894 = vmatpush1.msra.mxu0 0.0
        %895 = vmatprep.subr.mxu0 0.0
        %896 = vmatpush1.msra.mxu0 0.0
        %897 = vmatprep.subr.mxu0 0.0
        %898 = vmatpush1.msra.mxu0 0.0
        %899 = vmatprep.subr.mxu0 0.0
        %900 = vmatpush1.msra.mxu0 0.0
        %901 = vmatprep.subr.mxu0 0.0
        %902 = vmatpush1.msra.mxu0 0.0
        %903 = vmatprep.subr.mxu0 0.0
        %904 = vmatpush1.msra.mxu0 0.0
        %905 = vmatprep.subr.mxu0 0.0
        %906 = vmatpush1.msra.mxu0 0.0
        %907 = vmatprep.subr.mxu0 0.0
        %908 = vmatpush1.msra.mxu0 0.0
        %909 = vmatprep.subr.mxu0 0.0
        %910 = vmatpush1.msra.mxu0 0.0
        %911 = vmatprep.subr.mxu0 %v844
        %912 = vmatpush1.msra.mxu0 %v843
        %913 = vmatprep.subr.mxu0 %v842
        %914 = vmatpush1.msra.mxu0 %v841
        %915 = vmatprep.subr.mxu0 %v840
        %916 = vmatpush1.msra.mxu0 %v839
        %917 = vmatprep.subr.mxu0 %v838
        %918 = vmatpush1.msra.mxu0 %v837
        %919 = vmatprep.subr.mxu0 0.0
        %920 = vmatpush2.msra.mxu0 0.0
        %921 = vmatprep.subr.mxu0 0.0
        %922 = vmatpush2.msra.mxu0 0.0
        %923 = vmatprep.subr.mxu0 0.0
        %924 = vmatpush2.msra.mxu0 0.0
        %925 = vmatprep.subr.mxu0 0.0
        %926 = vmatpush2.msra.mxu0 0.0
        %927 = vmatprep.subr.mxu0 0.0
        %928 = vmatpush2.msra.mxu0 0.0
        %929 = vmatprep.subr.mxu0 0.0
        %930 = vmatpush2.msra.mxu0 0.0
        %931 = vmatprep.subr.mxu0 0.0
        %932 = vmatpush2.msra.mxu0 0.0
        %933 = vmatprep.subr.mxu0 0.0
        %934 = vmatpush2.msra.mxu0 0.0
        %935 = vmatprep.subr.mxu0 0.0
        %936 = vmatpush2.msra.mxu0 0.0
        %937 = vmatprep.subr.mxu0 0.0
        %938 = vmatpush2.msra.mxu0 0.0
        %939 = vmatprep.subr.mxu0 0.0
        %940 = vmatpush2.msra.mxu0 0.0
        %941 = vmatprep.subr.mxu0 0.0
        %942 = vmatpush2.msra.mxu0 0.0
        %943 = vmatprep.subr.mxu0 0.0
        %944 = vmatpush2.msra.mxu0 0.0
        %945 = vmatprep.subr.mxu0 0.0
        %946 = vmatpush2.msra.mxu0 0.0
        %947 = vmatprep.subr.mxu0 0.0
        %948 = vmatpush2.msra.mxu0 0.0
        %949 = vmatprep.subr.mxu0 0.0
        %950 = vmatpush2.msra.mxu0 0.0
        %951 = vmatprep.mubr.f32.mxu0 0.0
        %952 = vmatmul.mubr.f32.gmra.mxu0 %v876
        %v953 = vpop.f32.mrf.mxu0
        %v954 = vadd.f32 %v858, %v953
        %v955 = vpop.f32.mrf.mxu0
        %v956 = vadd.f32 %v858, %v955
        %957 = vmatprep.mubr.f32.mxu0 0.0
        %958 = vmatmul.mubr.f32.gmra.mxu0 %v879
        %v959 = vpop.f32.mrf.mxu0
        %v960 = vadd.f32 %v863, %v959
        %v961 = vpop.f32.mrf.mxu0
        %v962 = vadd.f32 %v863, %v961
        %963 = vmatprep.mubr.f32.mxu0 0.0
        %964 = vmatmul.mubr.f32.gmra.mxu0 %v882
        %v965 = vpop.f32.mrf.mxu0
        %v966 = vadd.f32 %v868, %v965
        %v967 = vpop.f32.mrf.mxu0
        %v968 = vadd.f32 %v868, %v967
        %969 = vmatprep.mubr.f32.mxu0 0.0
        %970 = vmatmul.mubr.f32.gmra.mxu0 %v885
        %v971 = vpop.f32.mrf.mxu0
        %v972 = vadd.f32 %v873, %v971
        %v973 = vpop.f32.mrf.mxu0
        %v974 = vadd.f32 %v873, %v973
        %975 = vdwg.mxu0
        %v978 = vcombine.low %v954, %v956
        %v980 = vunpack.c.l.s4 1983009808
        %v981 = vunpack.c.0.s8 %v980
        %v982 = vlaneseq
        %v983 = vshrl.u32 %v982, 7
        %v984 = vsub.s32 %v981, %v983
        %v985 = vrot.slane %v978, %v984
        %987 = vst [vmem:[%s267] sm:$0xf] %v985
        %v988 = vmul.f32 %v954, %v954
        %v989 = vmul.f32 %v956, %v956
        %v990 = vmul.f32 %v960, %v960
        %v991 = vmul.f32 %v962, %v962
        %v992 = vmul.f32 %v966, %v966
        %v993 = vmul.f32 %v968, %v968
        %v994 = vmul.f32 %v972, %v972
        %v995 = vmul.f32 %v974, %v974
        %v996 = vadd.f32 %v988, %v990
        %v997 = vadd.f32 %v996, %v992
        %v998 = vadd.f32 %v997, %v994
        %v999 = vrot.slane %v998, 4
        %v1000 = vadd.f32 %v998, %v999
        %v1001 = vrot.slane %v1000, 2
        %v1002 = vadd.f32 %v1000, %v1001
        %v1003 = vrot.slane %v1002, 1
        %v1004 = vadd.f32 %v1002, %v1003
        %v1005 = vadd.f32 %v989, %v991
        %v1006 = vadd.f32 %v1005, %v993
        %v1007 = vadd.f32 %v1006, %v995
        %v1008 = vrot.slane %v1007, 4
        %v1009 = vadd.f32 %v1007, %v1008
        %v1010 = vrot.slane %v1009, 2
        %v1011 = vadd.f32 %v1009, %v1010
        %v1012 = vrot.slane %v1011, 1
        %v1013 = vadd.f32 %v1011, %v1012
        %v1014 = vmax.f32 %v1004, 1e-24
        %v1015 = vmax.f32 %v1013, 1e-24
        %v1016 = vrsqrt.pop %v1014
        %v1017 = vrsqrt.pop %v1015
        %v1018 = vmul.f32 %v954, %v1016
        %v1019 = vmul.f32 %v956, %v1017
        %v1022 = vcombine.low %v1018, %v1019
        %v1024 = vunpack.c.l.s4 1983009808
        %v1025 = vunpack.c.0.s8 %v1024
        %v1026 = vlaneseq
        %v1027 = vshrl.u32 %v1026, 7
        %v1028 = vsub.s32 %v1025, %v1027
        %v1029 = vrot.slane %v1022, %v1028
        %1031 = vst [vmem:[%s273] sm:$0xf] %v1029
        %s1032 = smul.u32 2, %s17
        %p1033 = scmp.lt.s32.totalorder %s1032, 3
        %s1034 = scalar_select %p1033, %s1032, 3
        %s1035 = smul.addr %s1034, 2
        %s1036 = scalar_lea.vmem %s4, %s1035
        %s1037 = smul.u32 2, %s17
        %p1038 = scmp.lt.s32.totalorder %s1037, 3
        %s1039 = scalar_select %p1038, %s1037, 3
        %s1040 = smul.addr %s1039, 2
        %s1041 = scalar_lea.vmem %s5, %s1040
        // Predicated region
        $region60: #{phase_network_forward.1} parent=54 // pred_check
          %p1042 = pneg %p124
        $region61: #{phase_network_forward.1} parent=54 // pred_check_branch
          %1044 = sbr.rel (%p1042) target = $region63
        $region62: #{phase_network_forward.1} parent=54 // pred_region
          %s1045 = smul.u32 2, %s17
        $region63: #{phase_network_forward.1} parent=54 // pred_fallthru
          _
        // Predicated region
        $region64: #{phase_network_forward.1} parent=54 // pred_check
          %p1046 = pneg %p150
        $region65: #{phase_network_forward.1} parent=54 // pred_check_branch
          %1048 = sbr.rel (%p1046) target = $region67
        $region66: #{phase_network_forward.1} parent=54 // pred_region
          %s1049 = smul.u32 2, %s17
        $region67: #{phase_network_forward.1} parent=54 // pred_fallthru
          _
      $region55: #{phase_network_forward.1} parent=5 // pred_fallthru
        _
      %p1050 = scmp.le.s32.totalorder 2, %s12
      // Predicated region
      $region68: #{phase_network_forward.1} parent=5 // pred_check
        %p1051 = pneg %p1050
      $region69: #{phase_network_forward.1} parent=5 // pred_check_branch
        %1053 = sbr.rel (%p1051) target = $region71
      $region70: #{phase_network_forward.1} parent=5 // pred_region
        %s1054 = ssub.s32 %s12, 2
        // Predicated region
        $region72: #{phase_network_forward.1} parent=70 // pred_check
          %p1055 = pneg %p130
        $region73: #{phase_network_forward.1} parent=70 // pred_check_branch
          %1057 = sbr.rel (%p1055) target = $region75
        $region74: #{phase_network_forward.1} parent=70 // pred_region
          %s1058 = smul.u32 2, %s18
          %p1059 = scmp.lt.s32.totalorder %s1058, 3
          %s1060 = scalar_select %p1059, %s1058, 3
          %s1061 = smul.addr %s1060, 2
          %s1062 = scalar_lea.vmem %s4, %s1061
        $region75: #{phase_network_forward.1} parent=70 // pred_fallthru
          _
        // Predicated region
        $region76: #{phase_network_forward.1} parent=70 // pred_check
          %p1063 = pneg %p156
        $region77: #{phase_network_forward.1} parent=70 // pred_check_branch
          %1065 = sbr.rel (%p1063) target = $region79
        $region78: #{phase_network_forward.1} parent=70 // pred_region
          %s1066 = smul.u32 2, %s18
          %p1067 = scmp.lt.s32.totalorder %s1066, 3
          %s1068 = scalar_select %p1067, %s1066, 3
          %s1069 = smul.addr %s1068, 2
          %s1070 = scalar_lea.vmem %s5, %s1069
        $region79: #{phase_network_forward.1} parent=70 // pred_fallthru
          _
      $region71: #{phase_network_forward.1} parent=5 // pred_fallthru
        _
    $region6: #{phase_network_forward.1} parent=1 // loop_footer
      %s16 = sadd.s32 1, %s12
    $region7: #{phase_network_forward.1} parent=1 // loop_footer_branch
      %11 = sbr.rel target = $region3
    $region8: #{phase_network_forward.1} parent=1 // loop_exit
      _

</llo_original>
